<compile_context>
chip_gen: v7x
topology: tpu7x:2x2x1
jax: 0.10.0
libtpu: 0.0.40
codegen_flags: <defaults>
</compile_context>

<pallas_src>
import jax
import jax.numpy as jnp
from jax.experimental import pallas as pl
from jax.experimental.pallas import tpu as pltpu

LANE = 128
SMOOTH = 1e-5


def _sublane_multiple(dtype) -> int:
    # Packed-dtype minimum second-to-last tile dim: f32 -> 8, bf16 -> 16, int8 -> 32.
    return max(8, 32 // jnp.dtype(dtype).itemsize)


def _num_splits_and_semantics():
    """(num_splits, leading-axis grid semantics) appropriate for this device."""
    try:
        dev = jax.devices()[0]
        if dev.platform != "tpu":
            return 1, pltpu.ARBITRARY
        kind = (getattr(dev, "device_kind", "") or "").lower()
    except Exception:  # pragma: no cover - defensive
        return 1, pltpu.ARBITRARY
    if "v7" in kind or "7x" in kind:
        # v7x: 2 TensorCores per chip; CORE_PARALLEL actually shards the axis.
        return 2, pltpu.CORE_PARALLEL
    if "v4" in kind or "v5p" in kind:
        # Megacore chips: plain PARALLEL shards the grid axis across both cores.
        return 2, pltpu.PARALLEL
    # v5e / v6e: single TensorCore -- a split axis would just be a serial loop.
    return 1, pltpu.ARBITRARY


def _make_dice_kernel(tile_rows, blocks_per_split, total_valid):
    def kernel(x_ref, t_ref, acc_ref):
        c = pl.program_id(0)
        i = pl.program_id(1)

        # Zero this split's resident accumulator block on its first step.
        @pl.when(i == 0)
        def _():
            acc_ref[...] = jnp.zeros_like(acc_ref)

        row_start = (c * blocks_per_split + i) * tile_rows
        # A block is "interior" iff every element it covers is a real element
        # (also false for the fully out-of-range clamped duplicate block).
        is_interior = (row_start + tile_rows) * LANE <= total_valid

        def sigmoid_f32(v):
            # exp lands on the EUP slot; the clamp keeps exp(-x) finite so the
            # reciprocal never sees inf (sigmoid(-60) ~ 9e-27, i.e. exactly the
            # saturated answer at f32 precision).
            xf = jnp.maximum(v.astype(jnp.float32), -60.0)
            return pl.reciprocal(1.0 + jnp.exp(-xf))

        def fold(a):  # (tile_rows, LANE) -> (8, LANE); cross-vreg VPU adds, no XLU
            return jnp.sum(a.reshape(tile_rows // 8, 8, LANE), axis=0)

        def accumulate(s, t):
            acc_ref[0, 0] += fold(s * t)   # intersect partials
            acc_ref[0, 1] += fold(t * t)   # y_sum partials
            acc_ref[0, 2] += fold(s * s)   # z_sum partials

        @pl.when(is_interior)
        def _():  # fast path: no iota, no compare, no select
            accumulate(sigmoid_f32(x_ref[...]), t_ref[...].astype(jnp.float32))

        @pl.when(jnp.logical_not(is_interior))
        def _():  # boundary path: ragged tail / partial tile / clamped duplicate
            row_ids = row_start + jax.lax.broadcasted_iota(
                jnp.int32, (tile_rows, LANE), 0
            )
            lane_ids = jax.lax.broadcasted_iota(jnp.int32, (tile_rows, LANE), 1)
            valid = row_ids * LANE + lane_ids < total_valid
            s = jnp.where(valid, sigmoid_f32(x_ref[...]), 0.0)
            t = jnp.where(valid, t_ref[...].astype(jnp.float32), 0.0)
            accumulate(s, t)

    return kernel


def dice_loss(inputs, target, *, tile_rows=4096):
    """Pallas implementation of DiceLoss.forward(inputs, target) -> scalar."""
    bs = target.shape[0]
    x = inputs.reshape(bs, -1)
    t = target.reshape(bs, -1)
    assert x.shape == t.shape, (
        "predict {} & target {} shape do not match".format(x.shape, t.shape)
    )

    x = x.reshape(-1)
    t = t.reshape(-1)
    total = x.shape[0]

    # Lane-align the flat stream.  Common case (total % 128 == 0): free
    # reshape, zero extra HBM traffic.  The in-kernel flat-index mask makes the
    # pad value irrelevant, so plain zero padding is fine.
    # TODO(synk): a fully copy-free ragged path would need manual DMA of the
    # sub-128 tail; the padded copy below only triggers when total % 128 != 0.
    pad = (-total) % LANE
    if pad:
        x = jnp.pad(x, (0, pad))
        t = jnp.pad(t, (0, pad))
    rows = (total + pad) // LANE
    x2 = x.reshape(rows, LANE)
    t2 = t.reshape(rows, LANE)

    # Row tile: big for streaming efficiency, shrunk for tiny inputs, rounded
    # to the packed-dtype sublane multiple of the narrower input dtype.
    sub = max(_sublane_multiple(x2.dtype), _sublane_multiple(t2.dtype))
    tile = min(max(tile_rows, sub), ((rows + sub - 1) // sub) * sub)
    tile = max(sub, (tile // sub) * sub)
    row_blocks = pl.cdiv(rows, tile)

    num_splits, lead_sem = _num_splits_and_semantics()
    num_splits = min(num_splits, row_blocks)
    if num_splits == 1:
        lead_sem = pltpu.ARBITRARY
    bpc = pl.cdiv(row_blocks, num_splits)

    def in_map(c, i):
        # Clamp so a (fully-masked) trailing block of an odd split never
        # indexes past the last real block.
        return (jnp.minimum(c * bpc + i, row_blocks - 1), 0)

    partials = pl.pallas_call(
        _make_dice_kernel(tile, bpc, total),
        out_shape=jax.ShapeDtypeStruct((num_splits, 3, 8, LANE), jnp.float32),
        grid_spec=pltpu.PrefetchScalarGridSpec(
            num_scalar_prefetch=0,
            grid=(num_splits, bpc),
            in_specs=[
                pl.BlockSpec((tile, LANE), in_map),
                pl.BlockSpec((tile, LANE), in_map),
            ],
            out_specs=pl.BlockSpec((1, 3, 8, LANE), lambda c, i: (c, 0, 0, 0)),
        ),
        compiler_params=pltpu.CompilerParams(
            dimension_semantics=(lead_sem, pltpu.ARBITRARY),
            vmem_limit_bytes=32 * 1024 * 1024,
        ),
    )(x2, t2)

    # Tiny final reduction (num_splits*3*8*128 floats) + scalar dice math in XLA.
    sums = jnp.sum(partials, axis=(0, 2, 3))
    intersect, y_sum, z_sum = sums[0], sums[1], sums[2]
    dice = (2.0 * intersect + SMOOTH) / (z_sum + y_sum + SMOOTH)
    return (1.0 - dice).astype(jnp.float32)


def _dice_loss_ref(inputs, target):
    """Pure-JAX reference mirroring the PyTorch module."""
    bs = target.shape[0]
    s = jax.nn.sigmoid(inputs.reshape(bs, -1).astype(jnp.float32))
    t = target.reshape(bs, -1).astype(jnp.float32)
    intersect = jnp.sum(s * t)
    y_sum = jnp.sum(t * t)
    z_sum = jnp.sum(s * s)
    return 1.0 - (2.0 * intersect + SMOOTH) / (z_sum + y_sum + SMOOTH)


if __name__ == "__main__":
    key = jax.random.PRNGKey(0)
    k1, k2, k3, k4 = jax.random.split(key, 4)

    # 1) NCHW-style, lane-aligned: batch=2, channels=4, spatial=16x16.
    x1 = jax.random.normal(k1, (2, 4, 16, 16), dtype=jnp.float32)
    t1 = (jax.random.uniform(k2, (2, 4, 16, 16)) > 0.5).astype(jnp.float32)
    out1 = jax.block_until_ready(jax.jit(dice_loss)(x1, t1))
    ref1 = _dice_loss_ref(x1, t1)
    assert jnp.allclose(out1, ref1, atol=1e-5, rtol=1e-5), (out1, ref1)

    # 2) Misaligned element count (exercises the ragged-tail masked edge path).
    x2 = jax.random.normal(k3, (2, 3, 7, 11), dtype=jnp.float32)
    t2 = (jax.random.uniform(k4, (2, 3, 7, 11)) > 0.5).astype(jnp.float32)
    out2 = jax.block_until_ready(jax.jit(dice_loss)(x2, t2))
    ref2 = _dice_loss_ref(x2, t2)
    assert jnp.allclose(out2, ref2, atol=1e-5, rtol=1e-5), (out2, ref2)

    # 3) bf16 logits (exercises packed-sublane tile rounding + in-kernel cast).
    x3 = x1.astype(jnp.bfloat16)
    out3 = jax.block_until_ready(jax.jit(dice_loss)(x3, t1))
    ref3 = _dice_loss_ref(x3, t1)
    assert jnp.allclose(out3, ref3, atol=1e-5, rtol=1e-5), (out3, ref3)

    print("KERNEL_OK")
</pallas_src>

<mosaic_0001>
module attributes {stable_mosaic.version = 11 : i64} {
  func.func @kernel(%arg0: i32, %arg1: i32, %arg2: memref<16x128xf32, #tpu.memory_space<vmem>>, %arg3: memref<16x128xf32, #tpu.memory_space<vmem>>, %arg4: memref<1x3x8x128xf32, #tpu.memory_space<vmem>>) attributes {dimension_semantics = [#tpu.dimension_semantics<arbitrary>, #tpu.dimension_semantics<arbitrary>], iteration_bounds = array<i64: 1, 1>, scalar_prefetch = 0 : i64, scratch_operands = 0 : i64, tpu.core_type = #tpu.core_type<tc>, window_params = [{transform_indices = @transform_0, window_bounds = array<i64: 16, 128>}, {transform_indices = @transform_1, window_bounds = array<i64: 16, 128>}, {transform_indices = @transform_2, window_bounds = array<i64: 1, 3, 8, 128>}]} {
    %c0_i32 = arith.constant 0 : i32
    %0 = arith.cmpi eq, %arg1, %c0_i32 : i32
    %1 = arith.extui %0 : i1 to i32
    %c0_i32_0 = arith.constant 0 : i32
    %2 = arith.cmpi ne, %1, %c0_i32_0 : i32
    scf.if %2 {
      %cst = arith.constant 0.000000e+00 : f32
      %14 = vector.broadcast %cst : f32 to vector<1x3x8x128xf32>
      %c0 = arith.constant 0 : index
      %c0_4 = arith.constant 0 : index
      %c0_5 = arith.constant 0 : index
      %c0_6 = arith.constant 0 : index
      %15 = vector.load %arg4[%c0, %c0_4, %c0_5, %c0_6] : memref<1x3x8x128xf32, #tpu.memory_space<vmem>>, vector<1x3x8x128xf32>
      tpu.vector_store %arg4[%c0, %c0_4, %c0_5, %c0_6], %14 {strides = array<i32>} : memref<1x3x8x128xf32, #tpu.memory_space<vmem>>, vector<1x3x8x128xf32>,
    } else {
    }
    %c1_i32 = arith.constant 1 : i32
    %3 = arith.muli %arg0, %c1_i32 : i32
    %4 = arith.addi %3, %arg1 : i32
    %c16_i32 = arith.constant 16 : i32
    %5 = arith.muli %4, %c16_i32 : i32
    %c16_i32_1 = arith.constant 16 : i32
    %6 = arith.addi %5, %c16_i32_1 : i32
    %c128_i32 = arith.constant 128 : i32
    %7 = arith.muli %6, %c128_i32 : i32
    %c2048_i32 = arith.constant 2048 : i32
    %8 = arith.cmpi sle, %7, %c2048_i32 : i32
    %9 = arith.extui %8 : i1 to i32
    %c0_i32_2 = arith.constant 0 : i32
    %10 = arith.cmpi ne, %9, %c0_i32_2 : i32
    scf.if %10 {
      %c0 = arith.constant 0 : index
      %c0_4 = arith.constant 0 : index
      %14 = vector.load %arg2[%c0, %c0_4] : memref<16x128xf32, #tpu.memory_space<vmem>>, vector<16x128xf32>
      %cst = arith.constant -6.000000e+01 : f32
      %15 = vector.broadcast %cst : f32 to vector<16x128xf32>
      %16 = arith.maximumf %14, %15 : vector<16x128xf32>
      %cst_5 = arith.constant 0.000000e+00 : f32
      %17 = vector.broadcast %cst_5 : f32 to vector<16x128xf32>
      %18 = arith.subf %17, %16 : vector<16x128xf32>
      %19 = math.exp %18 : vector<16x128xf32>
      %cst_6 = arith.constant 1.000000e+00 : f32
      %20 = vector.broadcast %cst_6 : f32 to vector<16x128xf32>
      %21 = arith.addf %20, %19 : vector<16x128xf32>
      %22 = tpu.reciprocal %21 : vector<16x128xf32> -> vector<16x128xf32>
      %c0_7 = arith.constant 0 : index
      %c0_8 = arith.constant 0 : index
      %23 = vector.load %arg3[%c0_7, %c0_8] : memref<16x128xf32, #tpu.memory_space<vmem>>, vector<16x128xf32>
      %c0_9 = arith.constant 0 : index
      %c0_10 = arith.constant 0 : index
      %c0_11 = arith.constant 0 : index
      %c0_12 = arith.constant 0 : index
      %24 = vector.load %arg4[%c0_9, %c0_10, %c0_11, %c0_12] : memref<1x3x8x128xf32, #tpu.memory_space<vmem>>, vector<1x1x8x128xf32>
      %25 = vector.shape_cast %24 : vector<1x1x8x128xf32> to vector<8x128xf32>
      %26 = arith.mulf %22, %23 : vector<16x128xf32>
      %27 = vector.shape_cast %26 : vector<16x128xf32> to vector<2x8x128xf32>
      %cst_13 = arith.constant dense<0.000000e+00> : vector<8x128xf32>
      %28 = vector.multi_reduction <add>, %27, %cst_13 [0] : vector<2x8x128xf32> to vector<8x128xf32>
      %29 = arith.addf %25, %28 : vector<8x128xf32>
      %c0_14 = arith.constant 0 : index
      %c0_15 = arith.constant 0 : index
      %c0_16 = arith.constant 0 : index
      %c0_17 = arith.constant 0 : index
      %30 = vector.load %arg4[%c0_14, %c0_15, %c0_16, %c0_17] : memref<1x3x8x128xf32, #tpu.memory_space<vmem>>, vector<1x1x8x128xf32>
      %31 = vector.shape_cast %30 : vector<1x1x8x128xf32> to vector<8x128xf32>
      %32 = vector.shape_cast %29 : vector<8x128xf32> to vector<1x1x8x128xf32>
      tpu.vector_store %arg4[%c0_14, %c0_15, %c0_16, %c0_17], %32 {strides = array<i32>} : memref<1x3x8x128xf32, #tpu.memory_space<vmem>>, vector<1x1x8x128xf32>,
      %c0_18 = arith.constant 0 : index
      %c1 = arith.constant 1 : index
      %c0_19 = arith.constant 0 : index
      %c0_20 = arith.constant 0 : index
      %33 = vector.load %arg4[%c0_18, %c1, %c0_19, %c0_20] : memref<1x3x8x128xf32, #tpu.memory_space<vmem>>, vector<1x1x8x128xf32>
      %34 = vector.shape_cast %33 : vector<1x1x8x128xf32> to vector<8x128xf32>
      %35 = arith.mulf %23, %23 : vector<16x128xf32>
      %36 = vector.shape_cast %35 : vector<16x128xf32> to vector<2x8x128xf32>
      %cst_21 = arith.constant dense<0.000000e+00> : vector<8x128xf32>
      %37 = vector.multi_reduction <add>, %36, %cst_21 [0] : vector<2x8x128xf32> to vector<8x128xf32>
      %38 = arith.addf %34, %37 : vector<8x128xf32>
      %c0_22 = arith.constant 0 : index
      %c1_23 = arith.constant 1 : index
      %c0_24 = arith.constant 0 : index
      %c0_25 = arith.constant 0 : index
      %39 = vector.load %arg4[%c0_22, %c1_23, %c0_24, %c0_25] : memref<1x3x8x128xf32, #tpu.memory_space<vmem>>, vector<1x1x8x128xf32>
      %40 = vector.shape_cast %39 : vector<1x1x8x128xf32> to vector<8x128xf32>
      %41 = vector.shape_cast %38 : vector<8x128xf32> to vector<1x1x8x128xf32>
      tpu.vector_store %arg4[%c0_22, %c1_23, %c0_24, %c0_25], %41 {strides = array<i32>} : memref<1x3x8x128xf32, #tpu.memory_space<vmem>>, vector<1x1x8x128xf32>,
      %c0_26 = arith.constant 0 : index
      %c2 = arith.constant 2 : index
      %c0_27 = arith.constant 0 : index
      %c0_28 = arith.constant 0 : index
      %42 = vector.load %arg4[%c0_26, %c2, %c0_27, %c0_28] : memref<1x3x8x128xf32, #tpu.memory_space<vmem>>, vector<1x1x8x128xf32>
      %43 = vector.shape_cast %42 : vector<1x1x8x128xf32> to vector<8x128xf32>
      %44 = arith.mulf %22, %22 : vector<16x128xf32>
      %45 = vector.shape_cast %44 : vector<16x128xf32> to vector<2x8x128xf32>
      %cst_29 = arith.constant dense<0.000000e+00> : vector<8x128xf32>
      %46 = vector.multi_reduction <add>, %45, %cst_29 [0] : vector<2x8x128xf32> to vector<8x128xf32>
      %47 = arith.addf %43, %46 : vector<8x128xf32>
      %c0_30 = arith.constant 0 : index
      %c2_31 = arith.constant 2 : index
      %c0_32 = arith.constant 0 : index
      %c0_33 = arith.constant 0 : index
      %48 = vector.load %arg4[%c0_30, %c2_31, %c0_32, %c0_33] : memref<1x3x8x128xf32, #tpu.memory_space<vmem>>, vector<1x1x8x128xf32>
      %49 = vector.shape_cast %48 : vector<1x1x8x128xf32> to vector<8x128xf32>
      %50 = vector.shape_cast %47 : vector<8x128xf32> to vector<1x1x8x128xf32>
      tpu.vector_store %arg4[%c0_30, %c2_31, %c0_32, %c0_33], %50 {strides = array<i32>} : memref<1x3x8x128xf32, #tpu.memory_space<vmem>>, vector<1x1x8x128xf32>,
    } else {
    }
    %true = arith.constant true
    %11 = arith.xori %8, %true : i1
    %12 = arith.extui %11 : i1 to i32
    %c0_i32_3 = arith.constant 0 : i32
    %13 = arith.cmpi ne, %12, %c0_i32_3 : i32
    scf.if %13 {
      %14 = tpu.iota {dimensions = array<i32: 0>} : vector<16x128xi32>
      %15 = vector.broadcast %5 : i32 to vector<16x128xi32>
      %16 = arith.addi %15, %14 : vector<16x128xi32>
      %17 = tpu.iota {dimensions = array<i32: 1>} : vector<16x128xi32>
      %c128_i32_4 = arith.constant 128 : i32
      %18 = vector.broadcast %c128_i32_4 : i32 to vector<16x128xi32>
      %19 = arith.muli %16, %18 : vector<16x128xi32>
      %20 = arith.addi %19, %17 : vector<16x128xi32>
      %c2048_i32_5 = arith.constant 2048 : i32
      %21 = vector.broadcast %c2048_i32_5 : i32 to vector<16x128xi32>
      %22 = arith.cmpi slt, %20, %21 : vector<16x128xi32>
      %c0 = arith.constant 0 : index
      %c0_6 = arith.constant 0 : index
      %23 = vector.load %arg2[%c0, %c0_6] : memref<16x128xf32, #tpu.memory_space<vmem>>, vector<16x128xf32>
      %cst = arith.constant -6.000000e+01 : f32
      %24 = vector.broadcast %cst : f32 to vector<16x128xf32>
      %25 = arith.maximumf %23, %24 : vector<16x128xf32>
      %cst_7 = arith.constant 0.000000e+00 : f32
      %26 = vector.broadcast %cst_7 : f32 to vector<16x128xf32>
      %27 = arith.subf %26, %25 : vector<16x128xf32>
      %28 = math.exp %27 : vector<16x128xf32>
      %cst_8 = arith.constant 1.000000e+00 : f32
      %29 = vector.broadcast %cst_8 : f32 to vector<16x128xf32>
      %30 = arith.addf %29, %28 : vector<16x128xf32>
      %31 = tpu.reciprocal %30 : vector<16x128xf32> -> vector<16x128xf32>
      %cst_9 = arith.constant 0.000000e+00 : f32
      %32 = vector.broadcast %cst_9 : f32 to vector<16x128xf32>
      %33 = arith.select %22, %31, %32 : vector<16x128xi1>, vector<16x128xf32>
      %c0_10 = arith.constant 0 : index
      %c0_11 = arith.constant 0 : index
      %34 = vector.load %arg3[%c0_10, %c0_11] : memref<16x128xf32, #tpu.memory_space<vmem>>, vector<16x128xf32>
      %cst_12 = arith.constant 0.000000e+00 : f32
      %35 = vector.broadcast %cst_12 : f32 to vector<16x128xf32>
      %36 = arith.select %22, %34, %35 : vector<16x128xi1>, vector<16x128xf32>
      %c0_13 = arith.constant 0 : index
      %c0_14 = arith.constant 0 : index
      %c0_15 = arith.constant 0 : index
      %c0_16 = arith.constant 0 : index
      %37 = vector.load %arg4[%c0_13, %c0_14, %c0_15, %c0_16] : memref<1x3x8x128xf32, #tpu.memory_space<vmem>>, vector<1x1x8x128xf32>
      %38 = vector.shape_cast %37 : vector<1x1x8x128xf32> to vector<8x128xf32>
      %39 = arith.mulf %33, %36 : vector<16x128xf32>
      %40 = vector.shape_cast %39 : vector<16x128xf32> to vector<2x8x128xf32>
      %cst_17 = arith.constant dense<0.000000e+00> : vector<8x128xf32>
      %41 = vector.multi_reduction <add>, %40, %cst_17 [0] : vector<2x8x128xf32> to vector<8x128xf32>
      %42 = arith.addf %38, %41 : vector<8x128xf32>
      %c0_18 = arith.constant 0 : index
      %c0_19 = arith.constant 0 : index
      %c0_20 = arith.constant 0 : index
      %c0_21 = arith.constant 0 : index
      %43 = vector.load %arg4[%c0_18, %c0_19, %c0_20, %c0_21] : memref<1x3x8x128xf32, #tpu.memory_space<vmem>>, vector<1x1x8x128xf32>
      %44 = vector.shape_cast %43 : vector<1x1x8x128xf32> to vector<8x128xf32>
      %45 = vector.shape_cast %42 : vector<8x128xf32> to vector<1x1x8x128xf32>
      tpu.vector_store %arg4[%c0_18, %c0_19, %c0_20, %c0_21], %45 {strides = array<i32>} : memref<1x3x8x128xf32, #tpu.memory_space<vmem>>, vector<1x1x8x128xf32>,
      %c0_22 = arith.constant 0 : index
      %c1 = arith.constant 1 : index
      %c0_23 = arith.constant 0 : index
      %c0_24 = arith.constant 0 : index
      %46 = vector.load %arg4[%c0_22, %c1, %c0_23, %c0_24] : memref<1x3x8x128xf32, #tpu.memory_space<vmem>>, vector<1x1x8x128xf32>
      %47 = vector.shape_cast %46 : vector<1x1x8x128xf32> to vector<8x128xf32>
      %48 = arith.mulf %36, %36 : vector<16x128xf32>
      %49 = vector.shape_cast %48 : vector<16x128xf32> to vector<2x8x128xf32>
      %cst_25 = arith.constant dense<0.000000e+00> : vector<8x128xf32>
      %50 = vector.multi_reduction <add>, %49, %cst_25 [0] : vector<2x8x128xf32> to vector<8x128xf32>
      %51 = arith.addf %47, %50 : vector<8x128xf32>
      %c0_26 = arith.constant 0 : index
      %c1_27 = arith.constant 1 : index
      %c0_28 = arith.constant 0 : index
      %c0_29 = arith.constant 0 : index
      %52 = vector.load %arg4[%c0_26, %c1_27, %c0_28, %c0_29] : memref<1x3x8x128xf32, #tpu.memory_space<vmem>>, vector<1x1x8x128xf32>
      %53 = vector.shape_cast %52 : vector<1x1x8x128xf32> to vector<8x128xf32>
      %54 = vector.shape_cast %51 : vector<8x128xf32> to vector<1x1x8x128xf32>
      tpu.vector_store %arg4[%c0_26, %c1_27, %c0_28, %c0_29], %54 {strides = array<i32>} : memref<1x3x8x128xf32, #tpu.memory_space<vmem>>, vector<1x1x8x128xf32>,
      %c0_30 = arith.constant 0 : index
      %c2 = arith.constant 2 : index
      %c0_31 = arith.constant 0 : index
      %c0_32 = arith.constant 0 : index
      %55 = vector.load %arg4[%c0_30, %c2, %c0_31, %c0_32] : memref<1x3x8x128xf32, #tpu.memory_space<vmem>>, vector<1x1x8x128xf32>
      %56 = vector.shape_cast %55 : vector<1x1x8x128xf32> to vector<8x128xf32>
      %57 = arith.mulf %33, %33 : vector<16x128xf32>
      %58 = vector.shape_cast %57 : vector<16x128xf32> to vector<2x8x128xf32>
      %cst_33 = arith.constant dense<0.000000e+00> : vector<8x128xf32>
      %59 = vector.multi_reduction <add>, %58, %cst_33 [0] : vector<2x8x128xf32> to vector<8x128xf32>
      %60 = arith.addf %56, %59 : vector<8x128xf32>
      %c0_34 = arith.constant 0 : index
      %c2_35 = arith.constant 2 : index
      %c0_36 = arith.constant 0 : index
      %c0_37 = arith.constant 0 : index
      %61 = vector.load %arg4[%c0_34, %c2_35, %c0_36, %c0_37] : memref<1x3x8x128xf32, #tpu.memory_space<vmem>>, vector<1x1x8x128xf32>
      %62 = vector.shape_cast %61 : vector<1x1x8x128xf32> to vector<8x128xf32>
      %63 = vector.shape_cast %60 : vector<8x128xf32> to vector<1x1x8x128xf32>
      tpu.vector_store %arg4[%c0_34, %c2_35, %c0_36, %c0_37], %63 {strides = array<i32>} : memref<1x3x8x128xf32, #tpu.memory_space<vmem>>, vector<1x1x8x128xf32>,
    } else {
    }
    return
  }
  func.func @transform_0(%arg0: i32, %arg1: i32) -> (i32, i32) {
    %c1_i32 = arith.constant 1 : i32
    %0 = arith.muli %arg0, %c1_i32 : i32
    %1 = arith.addi %0, %arg1 : i32
    %c0_i32 = arith.constant 0 : i32
    %2 = arith.minsi %1, %c0_i32 : i32
    %c0_i32_0 = arith.constant 0 : i32
    %c0_i32_1 = arith.constant 0 : i32
    return %2, %c0_i32_0 : i32, i32
  }
  func.func @transform_1(%arg0: i32, %arg1: i32) -> (i32, i32) {
    %c1_i32 = arith.constant 1 : i32
    %0 = arith.muli %arg0, %c1_i32 : i32
    %1 = arith.addi %0, %arg1 : i32
    %c0_i32 = arith.constant 0 : i32
    %2 = arith.minsi %1, %c0_i32 : i32
    %c0_i32_0 = arith.constant 0 : i32
    %c0_i32_1 = arith.constant 0 : i32
    return %2, %c0_i32_0 : i32, i32
  }
  func.func @transform_2(%arg0: i32, %arg1: i32) -> (i32, i32, i32, i32) {
    %c0_i32 = arith.constant 0 : i32
    %c0_i32_0 = arith.constant 0 : i32
    %c0_i32_1 = arith.constant 0 : i32
    %c0_i32_2 = arith.constant 0 : i32
    return %arg0, %c0_i32, %c0_i32_0, %c0_i32_1 : i32, i32, i32, i32
  }
}

</mosaic_0001>

<llo_original>
// kernel: dice_loss.1
$region0: #{dice_loss.1}
  #allocation0 [shape = 'u32[]', space=smem, size = 0x4, offset = 0x4, fixed_abs, tag = 'smem constant byte address 0x4 - core index']
  #allocation1 [shape = 'u32[144,128]{1,0:T(1,128)}', space=vmem, size = 0x12000, scoped, tag = 'internal scratch']
  %s0 = inlined_call_operand.vmem [shape: f32[16,128], index: 0, kind: input, shape index: {}]
  %s1 = inlined_call_operand.vmem [shape: f32[16,128], index: 1, kind: input, shape index: {}]
  %s2 = inlined_call_operand.vmem [shape: f32[1,3,8,128], index: 2, kind: output, shape index: {}]
  %s3 = sld [smem:[#allocation0]]
  $region30: #{dice_loss.1} parent=0
    _
  %s5 = ssub.s32 1, %s3
  %s6 = scalar_select 0, %s5, %s3
  // Predicated region
  $region2: #{dice_loss.1} parent=0 // pred_check
    _
  $region3: #{dice_loss.1} parent=0 // pred_check_branch
    %8 = sbr.rel (0) target = $region5
  $region4: #{dice_loss.1} parent=0 // pred_region
    %s9 = sadd.s32 0, 0
    %p10 = scmp.lt.s32.totalorder %s9, 0
    %s11 = scalar_select %p10, %s9, 0
    %s12 = smul.u32 2, %s11
    %p13 = scmp.lt.s32.totalorder %s12, 1
    %s14 = scalar_select %p13, %s12, 1
    %s15 = smul.addr %s14, 8
    %s16 = scalar_lea.vmem %s0, %s15
    %s17 = sadd.s32 0, 0
    %p18 = scmp.lt.s32.totalorder %s17, 0
    %s19 = scalar_select %p18, %s17, 0
    %s20 = smul.u32 2, %s19
  $region5: #{dice_loss.1} parent=0 // pred_fallthru
    _
  // Predicated region
  $region6: #{dice_loss.1} parent=0 // pred_check
    _
  $region7: #{dice_loss.1} parent=0 // pred_check_branch
    %22 = sbr.rel (0) target = $region9
  $region8: #{dice_loss.1} parent=0 // pred_region
    %s23 = sadd.s32 0, 0
    %p24 = scmp.lt.s32.totalorder %s23, 0
    %s25 = scalar_select %p24, %s23, 0
    %s26 = smul.u32 2, %s25
    %p27 = scmp.lt.s32.totalorder %s26, 1
    %s28 = scalar_select %p27, %s26, 1
    %s29 = smul.addr %s28, 8
    %s30 = scalar_lea.vmem %s1, %s29
    %s31 = sadd.s32 0, 0
    %p32 = scmp.lt.s32.totalorder %s31, 0
    %s33 = scalar_select %p32, %s31, 0
    %s34 = smul.u32 2, %s33
  $region9: #{dice_loss.1} parent=0 // pred_fallthru
    _
  %s35 = sadd.s32 0, 0
  %p36 = scmp.lt.s32.totalorder %s35, 0
  %s37 = scalar_select %p36, %s35, 0
  %s38 = smul.u32 2, %s37
  %p39 = scmp.lt.s32.totalorder %s38, 1
  %s40 = scalar_select %p39, %s38, 1
  %s41 = smul.addr %s40, 8
  %s42 = scalar_lea.vmem %s0, %s41
  %s43 = sadd.s32 0, 0
  %p44 = scmp.lt.s32.totalorder %s43, 0
  %s45 = scalar_select %p44, %s43, 0
  %s46 = smul.u32 2, %s45
  %p47 = scmp.lt.s32.totalorder %s46, 1
  %s48 = scalar_select %p47, %s46, 1
  %s49 = smul.addr %s48, 8
  %s50 = scalar_lea.vmem %s1, %s49
  %s51 = sadd.s32 0, 0
  %p52 = scmp.lt.s32.totalorder %s51, 0
  %s53 = scalar_select %p52, %s51, 0
  %s54 = smul.u32 2, %s53
  %p55 = scmp.lt.s32.totalorder %s54, 1
  %s56 = scalar_select %p55, %s54, 1
  %s57 = smul.addr %s56, 8
  %s58 = scalar_lea.vmem %s0, %s57
  %s59 = sadd.s32 0, 0
  %p60 = scmp.lt.s32.totalorder %s59, 0
  %s61 = scalar_select %p60, %s59, 0
  %s62 = smul.u32 2, %s61
  %s63 = sadd.s32 0, 0
  %p64 = scmp.lt.s32.totalorder %s63, 0
  %s65 = scalar_select %p64, %s63, 0
  %s66 = smul.u32 2, %s65
  %p67 = scmp.lt.s32.totalorder %s66, 1
  %s68 = scalar_select %p67, %s66, 1
  %s69 = smul.addr %s68, 8
  %s70 = scalar_lea.vmem %s1, %s69
  %s71 = sadd.s32 0, 0
  %p72 = scmp.lt.s32.totalorder %s71, 0
  %s73 = scalar_select %p72, %s71, 0
  %s74 = smul.u32 2, %s73
  %p75 = scmp.eq.s32.totalorder 0, 0
  // Predicated region
  $region10: #{dice_loss.1} parent=0 // pred_check
    %p76 = pneg %p75
  $region11: #{dice_loss.1} parent=0 // pred_check_branch
    %78 = sbr.rel (%p76) target = $region13
  $region12: #{dice_loss.1} parent=0 // pred_region
    %79 = vst [vmem:[%s2] sm:$0xff] 0.0
    %80 = vst [vmem:[%s2 + $0x8] sm:$0xff] 0.0
    %81 = vst [vmem:[%s2 + $0x10] sm:$0xff] 0.0
  $region13: #{dice_loss.1} parent=0 // pred_fallthru
    _
  %s82 = sadd.s32 0, 0
  %s83 = smul.u32 %s82, 16
  %s84 = sadd.s32 %s83, 16
  %s85 = smul.u32 %s84, 128
  %p86 = scmp.le.s32.totalorder %s85, 2048
  // Predicated region
  $region14: #{dice_loss.1} parent=0 // pred_check
    %p87 = pneg %p86
  $region15: #{dice_loss.1} parent=0 // pred_check_branch
    %89 = sbr.rel (%p87) target = $region17
  $region16: #{dice_loss.1} parent=0 // pred_region
    %v90 = vld [vmem:[%s58] sm:$0xff]
    %v91 = vld [vmem:[%s58 + $0x8] sm:$0xff]
    %v92 = vmax.f32 %v90, -60.0
    %v93 = vmax.f32 %v91, -60.0
    %v94 = vsub.f32 0.0, %v92
    %v95 = vsub.f32 0.0, %v93
    %v96 = vmul.f32 %v94, 1.442695
    %v97 = vpow.pop %v96
    %v98 = vmul.f32 %v95, 1.442695
    %v99 = vpow.pop %v98
    %v100 = vadd.f32 %v97, 1.0
    %v101 = vadd.f32 %v99, 1.0
    %v102 = vrcp.pop %v100
    %v103 = vrcp.pop %v101
    %v104 = vld [vmem:[%s70] sm:$0xff]
    %v105 = vld [vmem:[%s70 + $0x8] sm:$0xff]
    %v106 = vld [vmem:[%s2] sm:$0xff]
    %v107 = vmul.f32 %v102, %v104
    %v108 = vmul.f32 %v103, %v105
    %v109 = vadd.f32 %v107, %v108
    %v110 = vadd.f32 %v106, %v109
    %111 = vst [vmem:[%s2] sm:$0xff] %v110
    %s112 = scalar_lea.vmem %s2, 8
    %v113 = vld [vmem:[%s112] sm:$0xff]
    %v114 = vmul.f32 %v104, %v104
    %v115 = vmul.f32 %v105, %v105
    %v116 = vadd.f32 %v114, %v115
    %v117 = vadd.f32 %v113, %v116
    %118 = vst [vmem:[%s112] sm:$0xff] %v117
    %s119 = scalar_lea.vmem %s2, 16
    %v120 = vld [vmem:[%s119] sm:$0xff]
    %v121 = vmul.f32 %v102, %v102
    %v122 = vmul.f32 %v103, %v103
    %v123 = vadd.f32 %v121, %v122
    %v124 = vadd.f32 %v120, %v123
    %125 = vst [vmem:[%s119] sm:$0xff] %v124
  $region17: #{dice_loss.1} parent=0 // pred_fallthru
    _
  %p126 = scmp.gt.s32.totalorder %s85, 2048
  // Predicated region
  $region18: #{dice_loss.1} parent=0 // pred_check
    %p127 = pneg %p126
  $region19: #{dice_loss.1} parent=0 // pred_check_branch
    %129 = sbr.rel (%p127) target = $region21
  $region20: #{dice_loss.1} parent=0 // pred_region
    %v130 = vlaneseq
    %v131 = vshrl.u32 %v130, 7
    %v132 = vadd.s32 %v131, 8
    %v133 = vstv %s83
    %v134 = vadd.s32 %v133, %v131
    %v135 = vadd.s32 %v133, %v132
    %v136 = vlaneseq
    %v137 = vand.u32 %v136, 127
    %v138 = vmul.u32 %v134, 128
    %v139 = vmul.u32 %v135, 128
    %v140 = vadd.s32 %v138, %v137
    %v141 = vadd.s32 %v139, %v137
    %vm142 = vcmp.lt.s32.totalorder %v140, 2048
    %vm143 = vcmp.lt.s32.totalorder %v141, 2048
    %v144 = vld [vmem:[%s58] sm:$0xff]
    %v145 = vld [vmem:[%s58 + $0x8] sm:$0xff]
    %v146 = vmax.f32 %v144, -60.0
    %v147 = vmax.f32 %v145, -60.0
    %v148 = vsub.f32 0.0, %v146
    %v149 = vsub.f32 0.0, %v147
    %v150 = vmul.f32 %v148, 1.442695
    %v151 = vpow.pop %v150
    %v152 = vmul.f32 %v149, 1.442695
    %v153 = vpow.pop %v152
    %v154 = vadd.f32 %v151, 1.0
    %v155 = vadd.f32 %v153, 1.0
    %v156 = vrcp.pop %v154
    %v157 = vrcp.pop %v155
    %v158 = vsel %vm142, %v156, 0.0
    %v159 = vsel %vm143, %v157, 0.0
    %v160 = vld [vmem:[%s70] sm:$0xff]
    %v161 = vld [vmem:[%s70 + $0x8] sm:$0xff]
    %v162 = vsel %vm142, %v160, 0.0
    %v163 = vsel %vm143, %v161, 0.0
    %v164 = vld [vmem:[%s2] sm:$0xff]
    %v165 = vmul.f32 %v158, %v162
    %v166 = vmul.f32 %v159, %v163
    %v167 = vadd.f32 %v165, %v166
    %v168 = vadd.f32 %v164, %v167
    %169 = vst [vmem:[%s2] sm:$0xff] %v168
    %s170 = scalar_lea.vmem %s2, 8
    %v171 = vld [vmem:[%s170] sm:$0xff]
    %v172 = vmul.f32 %v162, %v162
    %v173 = vmul.f32 %v163, %v163
    %v174 = vadd.f32 %v172, %v173
    %v175 = vadd.f32 %v171, %v174
    %176 = vst [vmem:[%s170] sm:$0xff] %v175
    %s177 = scalar_lea.vmem %s2, 16
    %v178 = vld [vmem:[%s177] sm:$0xff]
    %v179 = vmul.f32 %v158, %v158
    %v180 = vmul.f32 %v159, %v159
    %v181 = vadd.f32 %v179, %v180
    %v182 = vadd.f32 %v178, %v181
    %183 = vst [vmem:[%s177] sm:$0xff] %v182
  $region21: #{dice_loss.1} parent=0 // pred_fallthru
    _
  // Predicated region
  $region22: #{dice_loss.1} parent=0 // pred_check
    _
  $region23: #{dice_loss.1} parent=0 // pred_check_branch
    %185 = sbr.rel (0) target = $region25
  $region24: #{dice_loss.1} parent=0 // pred_region
    _
  $region25: #{dice_loss.1} parent=0 // pred_fallthru
    _
  // Predicated region
  $region26: #{dice_loss.1} parent=0 // pred_check
    _
  $region27: #{dice_loss.1} parent=0 // pred_check_branch
    %187 = sbr.rel (0) target = $region29
  $region28: #{dice_loss.1} parent=0 // pred_region
    _
  $region29: #{dice_loss.1} parent=0 // pred_fallthru
    _

</llo_original>
